<compile_context>
chip_gen: v7x
topology: tpu7x:2x2x1
jax: 0.10.0
libtpu: 0.0.40
codegen_flags: <defaults>
</compile_context>

<pallas_src>
import functools

import jax
import jax.numpy as jnp
from jax.experimental import pallas as pl
from jax.experimental.pallas import tpu as pltpu


def _round_up(x, m):
    return ((x + m - 1) // m) * m


# ---------------- fused kernel ----------------

def _mlp_kernel(x_ref, w1_ref, b1_ref, w2_ref, b2_ref, o_ref):
    # fc1 on the MXU: bf16 operands, f32 accumulation.
    x = x_ref[...].astype(jnp.bfloat16)
    z1 = jnp.dot(x, w1_ref[...], preferred_element_type=jnp.float32) + b1_ref[...]
    # sigmoid in f32: exp and approx reciprocal both land on the EUP slot.
    h = pl.reciprocal(1.0 + jnp.exp(-z1), approx=True)
    # fc2 on the MXU: bf16 operands, f32 accumulation.
    z2 = jnp.dot(h.astype(jnp.bfloat16), w2_ref[...],
                 preferred_element_type=jnp.float32)
    o_ref[...] = (z2 + b2_ref[...]).astype(o_ref.dtype)


@functools.partial(jax.jit, static_argnames=("output_dim", "block_m"))
def mlp_forward(x, params, *, output_dim, block_m=512):
    """x: (M, input_dim) f32 (or bf16) -> (M, output_dim) f32. Matches Net.forward."""
    M, K = x.shape
    w1, b1, w2, b2 = params["w1"], params["b1"], params["w2"], params["b2"]
    Hp = w1.shape[1]          # hidden dim, padded to a multiple of 128 at init
    Np = w2.shape[1]          # output dim, padded to a multiple of 128 at init

    # Row tiling. No wrapper-side pad of x: Pallas handles the ragged last row
    # block (OOB input rows produce garbage that is row-local; OOB output rows
    # are masked / sliced off below).
    Mp = _round_up(M, 8)                       # sublane-aligned output rows
    if M > block_m:
        bm = block_m
    elif Mp >= 16:
        # Split into at least two row tiles so the "parallel" axis can land on
        # both TensorCores on v7x even for mid-size batches.
        bm = _round_up(pl.cdiv(M, 2), 8)
    else:
        bm = Mp
    grid_m = pl.cdiv(M, bm)

    out_pad = pl.pallas_call(
        _mlp_kernel,
        out_shape=jax.ShapeDtypeStruct((Mp, Np), jnp.float32),
        grid_spec=pltpu.PrefetchScalarGridSpec(
            num_scalar_prefetch=0,
            grid=(grid_m,),
            in_specs=[
                pl.BlockSpec((bm, K), lambda i: (i, 0)),   # x row tile (streamed)
                pl.BlockSpec((K, Hp), lambda i: (0, 0)),   # w1 (resident, bf16)
                pl.BlockSpec((1, Hp), lambda i: (0, 0)),   # b1 (f32)
                pl.BlockSpec((Hp, Np), lambda i: (0, 0)),  # w2 (resident, bf16)
                pl.BlockSpec((1, Np), lambda i: (0, 0)),   # b2 (f32)
            ],
            out_specs=pl.BlockSpec((bm, Np), lambda i: (i, 0)),
        ),
        compiler_params=pltpu.CompilerParams(
            dimension_semantics=("parallel",),     # row tiles are independent
            vmem_limit_bytes=32 * 1024 * 1024,     # headroom for bm up to ~1024
        ),
    )(x, w1, b1, w2, b2)

    # Strip row / lane padding (cheap XLA slice; kernel stores stay lane-dense).
    return out_pad[:M, :output_dim]


# ---------------- params (layout/dtype transforms hoisted to init) ----------------

def init_params(key, input_dim, hid_size, output_dim):
    k1, k2, k3, k4 = jax.random.split(key, 4)
    lim1 = 1.0 / (input_dim ** 0.5)
    lim2 = 1.0 / (hid_size ** 0.5)
    # PyTorch-layout weights (out_features, in_features), default-style uniform init.
    w1_pt = jax.random.uniform(k1, (hid_size, input_dim), jnp.float32, -lim1, lim1)
    b1_pt = jax.random.uniform(k2, (hid_size,), jnp.float32, -lim1, lim1)
    w2_pt = jax.random.uniform(k3, (output_dim, hid_size), jnp.float32, -lim2, lim2)
    b2_pt = jax.random.uniform(k4, (output_dim,), jnp.float32, -lim2, lim2)

    # Pre-transpose to matmul layout, zero-pad lane dims to 128, and store the
    # matmul operands in bf16 — all once, at init.  (Padded hidden units:
    # z=0 -> sigmoid=0.5, but their w2 rows are zero so they contribute nothing;
    # padded output columns are zero and sliced away.)
    Hp = _round_up(hid_size, 128)
    Np = _round_up(output_dim, 128)
    w1 = jnp.zeros((input_dim, Hp), jnp.float32).at[:, :hid_size].set(w1_pt.T)
    b1 = jnp.zeros((1, Hp), jnp.float32).at[0, :hid_size].set(b1_pt)
    w2 = jnp.zeros((Hp, Np), jnp.float32).at[:hid_size, :output_dim].set(w2_pt.T)
    b2 = jnp.zeros((1, Np), jnp.float32).at[0, :output_dim].set(b2_pt)

    params = {
        "w1": w1.astype(jnp.bfloat16),
        "b1": b1,                        # biases stay f32 (added post-accumulation)
        "w2": w2.astype(jnp.bfloat16),
        "b2": b2,
    }
    raw = (w1_pt, b1_pt, w2_pt, b2_pt)
    return params, raw


if __name__ == "__main__":
    # 32x32 grayscale letter images -> 36 classes (letter-recognition MLP).
    input_dim, hid_size, output_dim = 1024, 64, 36
    batch = 4

    key = jax.random.PRNGKey(0)
    kx, kp = jax.random.split(key)
    x = jax.random.normal(kx, (batch, input_dim), jnp.float32)
    params, raw = init_params(kp, input_dim, hid_size, output_dim)

    out = jax.block_until_ready(mlp_forward(x, params, output_dim=output_dim))
    assert out.shape == (batch, output_dim) and out.dtype == jnp.float32

    # Pure-JAX f32 reference of the PyTorch forward: fc2(sigmoid(fc1(x))).
    # Tolerance relaxed vs the f32 reference because MXU operands are bf16
    # (f32 accumulation keeps the error well inside 5e-2 at these magnitudes).
    w1_pt, b1_pt, w2_pt, b2_pt = raw
    ref = jax.nn.sigmoid(x @ w1_pt.T + b1_pt) @ w2_pt.T + b2_pt
    err = float(jnp.max(jnp.abs(out - ref)))
    assert jnp.allclose(out, ref, rtol=5e-2, atol=5e-2), f"max abs err {err}"

    print("KERNEL_OK")
</pallas_src>

<mosaic_0001>
module attributes {stable_mosaic.version = 11 : i64} {
  func.func @_mlp_kernel(%arg0: i32, %arg1: memref<8x1024xf32, #tpu.memory_space<vmem>>, %arg2: memref<1024x128xbf16, #tpu.memory_space<vmem>>, %arg3: memref<1x128xf32, #tpu.memory_space<vmem>>, %arg4: memref<128x128xbf16, #tpu.memory_space<vmem>>, %arg5: memref<1x128xf32, #tpu.memory_space<vmem>>, %arg6: memref<8x128xf32, #tpu.memory_space<vmem>>) attributes {dimension_semantics = [#tpu.dimension_semantics<parallel>], iteration_bounds = array<i64: 1>, scalar_prefetch = 0 : i64, scratch_operands = 0 : i64, tpu.core_type = #tpu.core_type<tc>, window_params = [{transform_indices = @transform_0, window_bounds = array<i64: 8, 1024>}, {pipeline_mode = #tpu.pipeline_mode<synchronous>, transform_indices = @transform_1, window_bounds = array<i64: 1024, 128>}, {pipeline_mode = #tpu.pipeline_mode<synchronous>, transform_indices = @transform_2, window_bounds = array<i64: 1, 128>}, {pipeline_mode = #tpu.pipeline_mode<synchronous>, transform_indices = @transform_3, window_bounds = array<i64: 128, 128>}, {pipeline_mode = #tpu.pipeline_mode<synchronous>, transform_indices = @transform_4, window_bounds = array<i64: 1, 128>}, {transform_indices = @transform_5, window_bounds = array<i64: 8, 128>}]} {
    %c0 = arith.constant 0 : index
    %c0_0 = arith.constant 0 : index
    %0 = vector.load %arg1[%c0, %c0_0] : memref<8x1024xf32, #tpu.memory_space<vmem>>, vector<8x1024xf32>
    %1 = arith.truncf %0 : vector<8x1024xf32> to vector<8x1024xbf16>
    %c0_1 = arith.constant 0 : index
    %c0_2 = arith.constant 0 : index
    %2 = vector.load %arg2[%c0_1, %c0_2] : memref<1024x128xbf16, #tpu.memory_space<vmem>>, vector<1024x128xbf16>
    %cst = arith.constant dense<0.000000e+00> : vector<8x128xf32>
    %3 = tpu.matmul %1, %2, %cst {dimension_numbers = #tpu.dot_dimension_numbers<[1], [0], [0], [1], [0, 0, 1, 1], [], []>} : vector<8x1024xbf16>, vector<1024x128xbf16>, vector<8x128xf32> -> vector<8x128xf32>
    %c0_3 = arith.constant 0 : index
    %c0_4 = arith.constant 0 : index
    %4 = vector.load %arg3[%c0_3, %c0_4] : memref<1x128xf32, #tpu.memory_space<vmem>>, vector<1x128xf32>
    %5 = vector.broadcast %4 : vector<1x128xf32> to vector<8x128xf32>
    %6 = arith.addf %3, %5 : vector<8x128xf32>
    %cst_5 = arith.constant 0.000000e+00 : f32
    %7 = vector.broadcast %cst_5 : f32 to vector<8x128xf32>
    %8 = arith.subf %7, %6 : vector<8x128xf32>
    %9 = math.exp %8 : vector<8x128xf32>
    %cst_6 = arith.constant 1.000000e+00 : f32
    %10 = vector.broadcast %cst_6 : f32 to vector<8x128xf32>
    %11 = arith.addf %10, %9 : vector<8x128xf32>
    %12 = tpu.reciprocal %11 {approx = true} : vector<8x128xf32> -> vector<8x128xf32>
    %13 = arith.truncf %12 : vector<8x128xf32> to vector<8x128xbf16>
    %c0_7 = arith.constant 0 : index
    %c0_8 = arith.constant 0 : index
    %14 = vector.load %arg4[%c0_7, %c0_8] : memref<128x128xbf16, #tpu.memory_space<vmem>>, vector<128x128xbf16>
    %cst_9 = arith.constant dense<0.000000e+00> : vector<8x128xf32>
    %15 = tpu.matmul %13, %14, %cst_9 {dimension_numbers = #tpu.dot_dimension_numbers<[1], [0], [0], [1], [0, 0, 1, 1], [], []>} : vector<8x128xbf16>, vector<128x128xbf16>, vector<8x128xf32> -> vector<8x128xf32>
    %c0_10 = arith.constant 0 : index
    %c0_11 = arith.constant 0 : index
    %16 = vector.load %arg5[%c0_10, %c0_11] : memref<1x128xf32, #tpu.memory_space<vmem>>, vector<1x128xf32>
    %17 = vector.broadcast %16 : vector<1x128xf32> to vector<8x128xf32>
    %18 = arith.addf %15, %17 : vector<8x128xf32>
    %c0_12 = arith.constant 0 : index
    %c0_13 = arith.constant 0 : index
    %19 = vector.load %arg6[%c0_12, %c0_13] : memref<8x128xf32, #tpu.memory_space<vmem>>, vector<8x128xf32>
    tpu.vector_store %arg6[%c0_12, %c0_13], %18 {strides = array<i32>} : memref<8x128xf32, #tpu.memory_space<vmem>>, vector<8x128xf32>,
    return
  }
  func.func @transform_0(%arg0: i32) -> (i32, i32) {
    %c0_i32 = arith.constant 0 : i32
    %c0_i32_0 = arith.constant 0 : i32
    return %arg0, %c0_i32 : i32, i32
  }
  func.func @transform_1(%arg0: i32) -> (i32, i32) {
    %c0_i32 = arith.constant 0 : i32
    %c0_i32_0 = arith.constant 0 : i32
    %c0_i32_1 = arith.constant 0 : i32
    return %c0_i32, %c0_i32_0 : i32, i32
  }
  func.func @transform_2(%arg0: i32) -> (i32, i32) {
    %c0_i32 = arith.constant 0 : i32
    %c0_i32_0 = arith.constant 0 : i32
    %c0_i32_1 = arith.constant 0 : i32
    return %c0_i32, %c0_i32_0 : i32, i32
  }
  func.func @transform_3(%arg0: i32) -> (i32, i32) {
    %c0_i32 = arith.constant 0 : i32
    %c0_i32_0 = arith.constant 0 : i32
    %c0_i32_1 = arith.constant 0 : i32
    return %c0_i32, %c0_i32_0 : i32, i32
  }
  func.func @transform_4(%arg0: i32) -> (i32, i32) {
    %c0_i32 = arith.constant 0 : i32
    %c0_i32_0 = arith.constant 0 : i32
    %c0_i32_1 = arith.constant 0 : i32
    return %c0_i32, %c0_i32_0 : i32, i32
  }
  func.func @transform_5(%arg0: i32) -> (i32, i32) {
    %c0_i32 = arith.constant 0 : i32
    %c0_i32_0 = arith.constant 0 : i32
    return %arg0, %c0_i32 : i32, i32
  }
}

</mosaic_0001>

<llo_original>
// kernel: mlp_forward.1
$region0: #{mlp_forward.1}
  #allocation0 [shape = 'u32[]', space=smem, size = 0x4, offset = 0x4, fixed_abs, tag = 'smem constant byte address 0x4 - core index']
  #allocation1 [shape = 'u32[144,128]{1,0:T(1,128)}', space=vmem, size = 0x12000, scoped, tag = 'internal scratch']
  %s0 = inlined_call_operand.hbm [shape: f32[4,1024], index: 0, kind: input, shape index: {}]
  %s1 = inlined_call_operand.hbm [shape: bf16[1024,128], index: 1, kind: input, shape index: {}]
  %s2 = inlined_call_operand.vmem [shape: f32[1,128], index: 2, kind: input, shape index: {}]
  %s3 = inlined_call_operand.hbm [shape: bf16[128,128], index: 3, kind: input, shape index: {}]
  %s4 = inlined_call_operand.vmem [shape: f32[1,128], index: 4, kind: input, shape index: {}]
  %s5 = inlined_call_operand.vmem [shape: f32[8,128], index: 5, kind: output, shape index: {}]
  %s6 = sld [smem:[#allocation0]]
  $region42: #{mlp_forward.1} parent=0
    _
  %s8 = ssub.s32 1, %s6
  %s9 = scalar_select 0, %s8, %s6
  $region1: #{mlp_forward.1} parent=0
    #allocation2 [shape = 'u8[32768]{0}', space=vmem, size = 0x8000, scoped, tag = 'input window, operand 0, single buffered']
    #allocation3 [shape = 's32[1]{0}', space=sflag, size = 0x4, scoped, tag = 'scoped memory for mlp_forward.1']
    #allocation4 [shape = 'u8[262144]{0}', space=vmem, size = 0x40000, scoped, tag = 'input window, operand 1, single buffered']
    #allocation5 [shape = 's32[1]{0}', space=sflag, size = 0x4, scoped, tag = 'scoped memory for mlp_forward.1']
    #allocation6 [shape = 'u8[32768]{0}', space=vmem, size = 0x8000, scoped, tag = 'input window, operand 3, single buffered']
    %10 = vsyncpa [#allocation3], 0
    %11 = vsyncpa [#allocation5], 0
    // Predicated region
    $region2: #{mlp_forward.1} parent=1 // pred_check
      _
    $region3: #{mlp_forward.1} parent=1 // pred_check_branch
      %13 = sbr.rel (0) target = $region5
    $region4: #{mlp_forward.1} parent=1 // pred_region
      %s15 = ssub.s32 1024, 512
      %16 = vsyncadd [#allocation3], %s15
      %s17 = sshll.u32 [#allocation2], 4
      %s18 = int_to_ptr.vmem [resolvable:$true] %s17
      %23 = dma.hbm_to_vmem [thread:$0]  %s0, 512, %s18, [#allocation3], 512, 512, 32
    $region5: #{mlp_forward.1} parent=1 // pred_fallthru
      _
    // Predicated region
    $region6: #{mlp_forward.1} parent=1 // pred_check
      _
    $region7: #{mlp_forward.1} parent=1 // pred_check_branch
      %25 = sbr.rel (0) target = $region9
    $region8: #{mlp_forward.1} parent=1 // pred_region
      %s27 = ssub.s32 8192, 8192
      %28 = vsyncadd [#allocation5], %s27
      %s29 = sshll.u32 [#allocation4], 4
      %s30 = int_to_ptr.vmem [resolvable:$true] %s29
      %35 = dma.hbm_to_vmem [thread:$0]  %s1, 8192, %s30, [#allocation5], 64, 64, 4
    $region9: #{mlp_forward.1} parent=1 // pred_fallthru
      _
    // Predicated region
    $region10: #{mlp_forward.1} parent=1 // pred_check
      _
    $region11: #{mlp_forward.1} parent=1 // pred_check_branch
      %37 = sbr.rel (0) target = $region13
    $region12: #{mlp_forward.1} parent=1 // pred_region
      _
    $region13: #{mlp_forward.1} parent=1 // pred_fallthru
      _
    // Predicated region
    $region14: #{mlp_forward.1} parent=1 // pred_check
      _
    $region15: #{mlp_forward.1} parent=1 // pred_check_branch
      %39 = sbr.rel (0) target = $region17
    $region16: #{mlp_forward.1} parent=1 // pred_region
      %s41 = ssub.s32 1024, 1024
      %42 = vsyncadd [#allocation5], %s41
      %s43 = sshll.u32 [#allocation6], 4
      %s44 = int_to_ptr.vmem [resolvable:$true] %s43
      %49 = dma.hbm_to_vmem [thread:$0]  %s3, 1024, %s44, [#allocation5], 64, 64, 4
    $region17: #{mlp_forward.1} parent=1 // pred_fallthru
      _
    // Predicated region
    $region18: #{mlp_forward.1} parent=1 // pred_check
      _
    $region19: #{mlp_forward.1} parent=1 // pred_check_branch
      %51 = sbr.rel (0) target = $region21
    $region20: #{mlp_forward.1} parent=1 // pred_region
      _
    $region21: #{mlp_forward.1} parent=1 // pred_fallthru
      _
    // Predicated region
    $region22: #{mlp_forward.1} parent=1 // pred_check
      _
    $region23: #{mlp_forward.1} parent=1 // pred_check_branch
      %53 = sbr.rel (0) target = $region25
    $region24: #{mlp_forward.1} parent=1 // pred_region
      %54 = dma.done [#allocation3], 1024
    $region25: #{mlp_forward.1} parent=1 // pred_fallthru
      _
    // Predicated region
    $region26: #{mlp_forward.1} parent=1 // pred_check
      _
    $region27: #{mlp_forward.1} parent=1 // pred_check_branch
      %56 = sbr.rel (0) target = $region29
    $region28: #{mlp_forward.1} parent=1 // pred_region
      %57 = dma.done [#allocation5], 8192
    $region29: #{mlp_forward.1} parent=1 // pred_fallthru
      _
    // Predicated region
    $region30: #{mlp_forward.1} parent=1 // pred_check
      _
    $region31: #{mlp_forward.1} parent=1 // pred_check_branch
      %59 = sbr.rel (0) target = $region33
    $region32: #{mlp_forward.1} parent=1 // pred_region
      %60 = dma.done [#allocation5], 1024
    $region33: #{mlp_forward.1} parent=1 // pred_fallthru
      _
    %v62 = vld [vmem:[#allocation2] sm:$0xff]
    %v63 = vld [vmem:[#allocation2 + $0x8] sm:$0xff]
    %v64 = vld [vmem:[#allocation2 + $0x10] sm:$0xff]
    %v65 = vld [vmem:[#allocation2 + $0x18] sm:$0xff]
    %v66 = vld [vmem:[#allocation2 + $0x20] sm:$0xff]
    %v67 = vld [vmem:[#allocation2 + $0x28] sm:$0xff]
    %v68 = vld [vmem:[#allocation2 + $0x30] sm:$0xff]
    %v69 = vld [vmem:[#allocation2 + $0x38] sm:$0xff]
    %v78 = vcombine.low %v62, %v66
    %v79 = vcombine.high %v62, %v66
    %v80 = vcombine.low %v63, %v67
    %v81 = vcombine.high %v63, %v67
    %v82 = vcombine.low %v64, %v68
    %v83 = vcombine.high %v64, %v68
    %v84 = vcombine.low %v65, %v69
    %v85 = vcombine.high %v65, %v69
    %v94 = vpack.c.bf16 %v78, %v78
    %v95 = vpack.c.bf16 %v79, %v79
    %v96 = vpack.c.bf16 %v80, %v80
    %v97 = vpack.c.bf16 %v81, %v81
    %v98 = vpack.c.bf16 %v82, %v82
    %v99 = vpack.c.bf16 %v83, %v83
    %v100 = vpack.c.bf16 %v84, %v84
    %v101 = vpack.c.bf16 %v85, %v85
    %v102 = vld [vmem:[#allocation4] sm:$0xf]
    %v103 = vld [vmem:[#allocation4 + $0x4] sm:$0xf]
    %v104 = vld [vmem:[#allocation4 + $0x8] sm:$0xf]
    %v105 = vld [vmem:[#allocation4 + $0xc] sm:$0xf]
    %v106 = vld [vmem:[#allocation4 + $0x10] sm:$0xf]
    %v107 = vld [vmem:[#allocation4 + $0x14] sm:$0xf]
    %v108 = vld [vmem:[#allocation4 + $0x18] sm:$0xf]
    %v109 = vld [vmem:[#allocation4 + $0x1c] sm:$0xf]
    %v110 = vld [vmem:[#allocation4 + $0x20] sm:$0xf]
    %v111 = vld [vmem:[#allocation4 + $0x24] sm:$0xf]
    %v112 = vld [vmem:[#allocation4 + $0x28] sm:$0xf]
    %v113 = vld [vmem:[#allocation4 + $0x2c] sm:$0xf]
    %v114 = vld [vmem:[#allocation4 + $0x30] sm:$0xf]
    %v115 = vld [vmem:[#allocation4 + $0x34] sm:$0xf]
    %v116 = vld [vmem:[#allocation4 + $0x38] sm:$0xf]
    %v117 = vld [vmem:[#allocation4 + $0x3c] sm:$0xf]
    %v118 = vld [vmem:[#allocation4 + $0x40] sm:$0xf]
    %v119 = vld [vmem:[#allocation4 + $0x44] sm:$0xf]
    %v120 = vld [vmem:[#allocation4 + $0x48] sm:$0xf]
    %v121 = vld [vmem:[#allocation4 + $0x4c] sm:$0xf]
    %v122 = vld [vmem:[#allocation4 + $0x50] sm:$0xf]
    %v123 = vld [vmem:[#allocation4 + $0x54] sm:$0xf]
    %v124 = vld [vmem:[#allocation4 + $0x58] sm:$0xf]
    %v125 = vld [vmem:[#allocation4 + $0x5c] sm:$0xf]
    %v126 = vld [vmem:[#allocation4 + $0x60] sm:$0xf]
    %v127 = vld [vmem:[#allocation4 + $0x64] sm:$0xf]
    %v128 = vld [vmem:[#allocation4 + $0x68] sm:$0xf]
    %v129 = vld [vmem:[#allocation4 + $0x6c] sm:$0xf]
    %v130 = vld [vmem:[#allocation4 + $0x70] sm:$0xf]
    %v131 = vld [vmem:[#allocation4 + $0x74] sm:$0xf]
    %v132 = vld [vmem:[#allocation4 + $0x78] sm:$0xf]
    %v133 = vld [vmem:[#allocation4 + $0x7c] sm:$0xf]
    %v134 = vld [vmem:[#allocation4 + $0x80] sm:$0xf]
    %v135 = vld [vmem:[#allocation4 + $0x84] sm:$0xf]
    %v136 = vld [vmem:[#allocation4 + $0x88] sm:$0xf]
    %v137 = vld [vmem:[#allocation4 + $0x8c] sm:$0xf]
    %v138 = vld [vmem:[#allocation4 + $0x90] sm:$0xf]
    %v139 = vld [vmem:[#allocation4 + $0x94] sm:$0xf]
    %v140 = vld [vmem:[#allocation4 + $0x98] sm:$0xf]
    %v141 = vld [vmem:[#allocation4 + $0x9c] sm:$0xf]
    %v142 = vld [vmem:[#allocation4 + $0xa0] sm:$0xf]
    %v143 = vld [vmem:[#allocation4 + $0xa4] sm:$0xf]
    %v144 = vld [vmem:[#allocation4 + $0xa8] sm:$0xf]
    %v145 = vld [vmem:[#allocation4 + $0xac] sm:$0xf]
    %v146 = vld [vmem:[#allocation4 + $0xb0] sm:$0xf]
    %v147 = vld [vmem:[#allocation4 + $0xb4] sm:$0xf]
    %v148 = vld [vmem:[#allocation4 + $0xb8] sm:$0xf]
    %v149 = vld [vmem:[#allocation4 + $0xbc] sm:$0xf]
    %v150 = vld [vmem:[#allocation4 + $0xc0] sm:$0xf]
    %v151 = vld [vmem:[#allocation4 + $0xc4] sm:$0xf]
    %v152 = vld [vmem:[#allocation4 + $0xc8] sm:$0xf]
    %v153 = vld [vmem:[#allocation4 + $0xcc] sm:$0xf]
    %v154 = vld [vmem:[#allocation4 + $0xd0] sm:$0xf]
    %v155 = vld [vmem:[#allocation4 + $0xd4] sm:$0xf]
    %v156 = vld [vmem:[#allocation4 + $0xd8] sm:$0xf]
    %v157 = vld [vmem:[#allocation4 + $0xdc] sm:$0xf]
    %v158 = vld [vmem:[#allocation4 + $0xe0] sm:$0xf]
    %v159 = vld [vmem:[#allocation4 + $0xe4] sm:$0xf]
    %v160 = vld [vmem:[#allocation4 + $0xe8] sm:$0xf]
    %v161 = vld [vmem:[#allocation4 + $0xec] sm:$0xf]
    %v162 = vld [vmem:[#allocation4 + $0xf0] sm:$0xf]
    %v163 = vld [vmem:[#allocation4 + $0xf4] sm:$0xf]
    %v164 = vld [vmem:[#allocation4 + $0xf8] sm:$0xf]
    %v165 = vld [vmem:[#allocation4 + $0xfc] sm:$0xf]
    %v166 = vld [vmem:[#allocation4 + $0x100] sm:$0xf]
    %v167 = vld [vmem:[#allocation4 + $0x104] sm:$0xf]
    %v168 = vld [vmem:[#allocation4 + $0x108] sm:$0xf]
    %v169 = vld [vmem:[#allocation4 + $0x10c] sm:$0xf]
    %v170 = vld [vmem:[#allocation4 + $0x110] sm:$0xf]
    %v171 = vld [vmem:[#allocation4 + $0x114] sm:$0xf]
    %v172 = vld [vmem:[#allocation4 + $0x118] sm:$0xf]
    %v173 = vld [vmem:[#allocation4 + $0x11c] sm:$0xf]
    %v174 = vld [vmem:[#allocation4 + $0x120] sm:$0xf]
    %v175 = vld [vmem:[#allocation4 + $0x124] sm:$0xf]
    %v176 = vld [vmem:[#allocation4 + $0x128] sm:$0xf]
    %v177 = vld [vmem:[#allocation4 + $0x12c] sm:$0xf]
    %v178 = vld [vmem:[#allocation4 + $0x130] sm:$0xf]
    %v179 = vld [vmem:[#allocation4 + $0x134] sm:$0xf]
    %v180 = vld [vmem:[#allocation4 + $0x138] sm:$0xf]
    %v181 = vld [vmem:[#allocation4 + $0x13c] sm:$0xf]
    %v182 = vld [vmem:[#allocation4 + $0x140] sm:$0xf]
    %v183 = vld [vmem:[#allocation4 + $0x144] sm:$0xf]
    %v184 = vld [vmem:[#allocation4 + $0x148] sm:$0xf]
    %v185 = vld [vmem:[#allocation4 + $0x14c] sm:$0xf]
    %v186 = vld [vmem:[#allocation4 + $0x150] sm:$0xf]
    %v187 = vld [vmem:[#allocation4 + $0x154] sm:$0xf]
    %v188 = vld [vmem:[#allocation4 + $0x158] sm:$0xf]
    %v189 = vld [vmem:[#allocation4 + $0x15c] sm:$0xf]
    %v190 = vld [vmem:[#allocation4 + $0x160] sm:$0xf]
    %v191 = vld [vmem:[#allocation4 + $0x164] sm:$0xf]
    %v192 = vld [vmem:[#allocation4 + $0x168] sm:$0xf]
    %v193 = vld [vmem:[#allocation4 + $0x16c] sm:$0xf]
    %v194 = vld [vmem:[#allocation4 + $0x170] sm:$0xf]
    %v195 = vld [vmem:[#allocation4 + $0x174] sm:$0xf]
    %v196 = vld [vmem:[#allocation4 + $0x178] sm:$0xf]
    %v197 = vld [vmem:[#allocation4 + $0x17c] sm:$0xf]
    %v198 = vld [vmem:[#allocation4 + $0x180] sm:$0xf]
    %v199 = vld [vmem:[#allocation4 + $0x184] sm:$0xf]
    %v200 = vld [vmem:[#allocation4 + $0x188] sm:$0xf]
    %v201 = vld [vmem:[#allocation4 + $0x18c] sm:$0xf]
    %v202 = vld [vmem:[#allocation4 + $0x190] sm:$0xf]
    %v203 = vld [vmem:[#allocation4 + $0x194] sm:$0xf]
    %v204 = vld [vmem:[#allocation4 + $0x198] sm:$0xf]
    %v205 = vld [vmem:[#allocation4 + $0x19c] sm:$0xf]
    %v206 = vld [vmem:[#allocation4 + $0x1a0] sm:$0xf]
    %v207 = vld [vmem:[#allocation4 + $0x1a4] sm:$0xf]
    %v208 = vld [vmem:[#allocation4 + $0x1a8] sm:$0xf]
    %v209 = vld [vmem:[#allocation4 + $0x1ac] sm:$0xf]
    %v210 = vld [vmem:[#allocation4 + $0x1b0] sm:$0xf]
    %v211 = vld [vmem:[#allocation4 + $0x1b4] sm:$0xf]
    %v212 = vld [vmem:[#allocation4 + $0x1b8] sm:$0xf]
    %v213 = vld [vmem:[#allocation4 + $0x1bc] sm:$0xf]
    %v214 = vld [vmem:[#allocation4 + $0x1c0] sm:$0xf]
    %v215 = vld [vmem:[#allocation4 + $0x1c4] sm:$0xf]
    %v216 = vld [vmem:[#allocation4 + $0x1c8] sm:$0xf]
    %v217 = vld [vmem:[#allocation4 + $0x1cc] sm:$0xf]
    %v218 = vld [vmem:[#allocation4 + $0x1d0] sm:$0xf]
    %v219 = vld [vmem:[#allocation4 + $0x1d4] sm:$0xf]
    %v220 = vld [vmem:[#allocation4 + $0x1d8] sm:$0xf]
    %v221 = vld [vmem:[#allocation4 + $0x1dc] sm:$0xf]
    %v222 = vld [vmem:[#allocation4 + $0x1e0] sm:$0xf]
    %v223 = vld [vmem:[#allocation4 + $0x1e4] sm:$0xf]
    %v224 = vld [vmem:[#allocation4 + $0x1e8] sm:$0xf]
    %v225 = vld [vmem:[#allocation4 + $0x1ec] sm:$0xf]
    %v226 = vld [vmem:[#allocation4 + $0x1f0] sm:$0xf]
    %v227 = vld [vmem:[#allocation4 + $0x1f4] sm:$0xf]
    %v228 = vld [vmem:[#allocation4 + $0x1f8] sm:$0xf]
    %v229 = vld [vmem:[#allocation4 + $0x1fc] sm:$0xf]
    %v230 = vld [vmem:[%s2] sm:$0x1]
    %v232 = vlaneseq
    %v233 = vshrl.u32 %v232, 7
    %v234 = vsub.s32 0, %v233
    %v235 = vrot.slane %v230, %v234
    %v365 = vunpack.c.l.b16 %v102
    %v366 = vunpack.c.l.b16 %v103
    %v367 = vunpack.c.l.b16 %v104
    %v368 = vunpack.c.l.b16 %v105
    %v369 = vunpack.c.l.b16 %v106
    %v370 = vunpack.c.l.b16 %v107
    %v371 = vunpack.c.l.b16 %v108
    %v372 = vunpack.c.l.b16 %v109
    %v373 = vunpack.c.l.b16 %v110
    %v374 = vunpack.c.l.b16 %v111
    %v375 = vunpack.c.l.b16 %v112
    %v376 = vunpack.c.l.b16 %v113
    %v377 = vunpack.c.l.b16 %v114
    %v378 = vunpack.c.l.b16 %v115
    %v379 = vunpack.c.l.b16 %v116
    %v380 = vunpack.c.l.b16 %v117
    %v381 = vunpack.c.l.b16 %v118
    %v382 = vunpack.c.l.b16 %v119
    %v383 = vunpack.c.l.b16 %v120
    %v384 = vunpack.c.l.b16 %v121
    %v385 = vunpack.c.l.b16 %v122
    %v386 = vunpack.c.l.b16 %v123
    %v387 = vunpack.c.l.b16 %v124
    %v388 = vunpack.c.l.b16 %v125
    %v389 = vunpack.c.l.b16 %v126
    %v390 = vunpack.c.l.b16 %v127
    %v391 = vunpack.c.l.b16 %v128
    %v392 = vunpack.c.l.b16 %v129
    %v393 = vunpack.c.l.b16 %v130
    %v394 = vunpack.c.l.b16 %v131
    %v395 = vunpack.c.l.b16 %v132
    %v396 = vunpack.c.l.b16 %v133
    %v397 = vunpack.c.l.b16 %v134
    %v398 = vunpack.c.l.b16 %v135
    %v399 = vunpack.c.l.b16 %v136
    %v400 = vunpack.c.l.b16 %v137
    %v401 = vunpack.c.l.b16 %v138
    %v402 = vunpack.c.l.b16 %v139
    %v403 = vunpack.c.l.b16 %v140
    %v404 = vunpack.c.l.b16 %v141
    %v405 = vunpack.c.l.b16 %v142
    %v406 = vunpack.c.l.b16 %v143
    %v407 = vunpack.c.l.b16 %v144
    %v408 = vunpack.c.l.b16 %v145
    %v409 = vunpack.c.l.b16 %v146
    %v410 = vunpack.c.l.b16 %v147
    %v411 = vunpack.c.l.b16 %v148
    %v412 = vunpack.c.l.b16 %v149
    %v413 = vunpack.c.l.b16 %v150
    %v414 = vunpack.c.l.b16 %v151
    %v415 = vunpack.c.l.b16 %v152
    %v416 = vunpack.c.l.b16 %v153
    %v417 = vunpack.c.l.b16 %v154
    %v418 = vunpack.c.l.b16 %v155
    %v419 = vunpack.c.l.b16 %v156
    %v420 = vunpack.c.l.b16 %v157
    %v421 = vunpack.c.l.b16 %v158
    %v422 = vunpack.c.l.b16 %v159
    %v423 = vunpack.c.l.b16 %v160
    %v424 = vunpack.c.l.b16 %v161
    %v425 = vunpack.c.l.b16 %v162
    %v426 = vunpack.c.l.b16 %v163
    %v427 = vunpack.c.l.b16 %v164
    %v428 = vunpack.c.l.b16 %v165
    %v429 = vunpack.c.l.b16 %v166
    %v430 = vunpack.c.l.b16 %v167
    %v431 = vunpack.c.l.b16 %v168
    %v432 = vunpack.c.l.b16 %v169
    %v433 = vunpack.c.l.b16 %v170
    %v434 = vunpack.c.l.b16 %v171
    %v435 = vunpack.c.l.b16 %v172
    %v436 = vunpack.c.l.b16 %v173
    %v437 = vunpack.c.l.b16 %v174
    %v438 = vunpack.c.l.b16 %v175
    %v439 = vunpack.c.l.b16 %v176
    %v440 = vunpack.c.l.b16 %v177
    %v441 = vunpack.c.l.b16 %v178
    %v442 = vunpack.c.l.b16 %v179
    %v443 = vunpack.c.l.b16 %v180
    %v444 = vunpack.c.l.b16 %v181
    %v445 = vunpack.c.l.b16 %v182
    %v446 = vunpack.c.l.b16 %v183
    %v447 = vunpack.c.l.b16 %v184
    %v448 = vunpack.c.l.b16 %v185
    %v449 = vunpack.c.l.b16 %v186
    %v450 = vunpack.c.l.b16 %v187
    %v451 = vunpack.c.l.b16 %v188
    %v452 = vunpack.c.l.b16 %v189
    %v453 = vunpack.c.l.b16 %v190
    %v454 = vunpack.c.l.b16 %v191
    %v455 = vunpack.c.l.b16 %v192
    %v456 = vunpack.c.l.b16 %v193
    %v457 = vunpack.c.l.b16 %v194
    %v458 = vunpack.c.l.b16 %v195
    %v459 = vunpack.c.l.b16 %v196
    %v460 = vunpack.c.l.b16 %v197
    %v461 = vunpack.c.l.b16 %v198
    %v462 = vunpack.c.l.b16 %v199
    %v463 = vunpack.c.l.b16 %v200
    %v464 = vunpack.c.l.b16 %v201
    %v465 = vunpack.c.l.b16 %v202
    %v466 = vunpack.c.l.b16 %v203
    %v467 = vunpack.c.l.b16 %v204
    %v468 = vunpack.c.l.b16 %v205
    %v469 = vunpack.c.l.b16 %v206
    %v470 = vunpack.c.l.b16 %v207
    %v471 = vunpack.c.l.b16 %v208
    %v472 = vunpack.c.l.b16 %v209
    %v473 = vunpack.c.l.b16 %v210
    %v474 = vunpack.c.l.b16 %v211
    %v475 = vunpack.c.l.b16 %v212
    %v476 = vunpack.c.l.b16 %v213
    %v477 = vunpack.c.l.b16 %v214
    %v478 = vunpack.c.l.b16 %v215
    %v479 = vunpack.c.l.b16 %v216
    %v480 = vunpack.c.l.b16 %v217
    %v481 = vunpack.c.l.b16 %v218
    %v482 = vunpack.c.l.b16 %v219
    %v483 = vunpack.c.l.b16 %v220
    %v484 = vunpack.c.l.b16 %v221
    %v485 = vunpack.c.l.b16 %v222
    %v486 = vunpack.c.l.b16 %v223
    %v487 = vunpack.c.l.b16 %v224
    %v488 = vunpack.c.l.b16 %v225
    %v489 = vunpack.c.l.b16 %v226
    %v490 = vunpack.c.l.b16 %v227
    %v491 = vunpack.c.l.b16 %v228
    %v492 = vunpack.c.l.b16 %v229
    %v493 = vpack.c.b16 %v366, %v365
    %v494 = vpack.c.b16 %v368, %v367
    %v495 = vpack.c.b16 %v370, %v369
    %v496 = vpack.c.b16 %v372, %v371
    %v497 = vpack.c.b16 %v374, %v373
    %v498 = vpack.c.b16 %v376, %v375
    %v499 = vpack.c.b16 %v378, %v377
    %v500 = vpack.c.b16 %v380, %v379
    %v501 = vpack.c.b16 %v382, %v381
    %v502 = vpack.c.b16 %v384, %v383
    %v503 = vpack.c.b16 %v386, %v385
    %v504 = vpack.c.b16 %v388, %v387
    %v505 = vpack.c.b16 %v390, %v389
    %v506 = vpack.c.b16 %v392, %v391
    %v507 = vpack.c.b16 %v394, %v393
    %v508 = vpack.c.b16 %v396, %v395
    %v509 = vpack.c.b16 %v398, %v397
    %v510 = vpack.c.b16 %v400, %v399
    %v511 = vpack.c.b16 %v402, %v401
    %v512 = vpack.c.b16 %v404, %v403
    %v513 = vpack.c.b16 %v406, %v405
    %v514 = vpack.c.b16 %v408, %v407
    %v515 = vpack.c.b16 %v410, %v409
    %v516 = vpack.c.b16 %v412, %v411
    %v517 = vpack.c.b16 %v414, %v413
    %v518 = vpack.c.b16 %v416, %v415
    %v519 = vpack.c.b16 %v418, %v417
    %v520 = vpack.c.b16 %v420, %v419
    %v521 = vpack.c.b16 %v422, %v421
    %v522 = vpack.c.b16 %v424, %v423
    %v523 = vpack.c.b16 %v426, %v425
    %v524 = vpack.c.b16 %v428, %v427
    %v525 = vpack.c.b16 %v430, %v429
    %v526 = vpack.c.b16 %v432, %v431
    %v527 = vpack.c.b16 %v434, %v433
    %v528 = vpack.c.b16 %v436, %v435
    %v529 = vpack.c.b16 %v438, %v437
    %v530 = vpack.c.b16 %v440, %v439
    %v531 = vpack.c.b16 %v442, %v441
    %v532 = vpack.c.b16 %v444, %v443
    %v533 = vpack.c.b16 %v446, %v445
    %v534 = vpack.c.b16 %v448, %v447
    %v535 = vpack.c.b16 %v450, %v449
    %v536 = vpack.c.b16 %v452, %v451
    %v537 = vpack.c.b16 %v454, %v453
    %v538 = vpack.c.b16 %v456, %v455
    %v539 = vpack.c.b16 %v458, %v457
    %v540 = vpack.c.b16 %v460, %v459
    %v541 = vpack.c.b16 %v462, %v461
    %v542 = vpack.c.b16 %v464, %v463
    %v543 = vpack.c.b16 %v466, %v465
    %v544 = vpack.c.b16 %v468, %v467
    %v545 = vpack.c.b16 %v470, %v469
    %v546 = vpack.c.b16 %v472, %v471
    %v547 = vpack.c.b16 %v474, %v473
    %v548 = vpack.c.b16 %v476, %v475
    %v549 = vpack.c.b16 %v478, %v477
    %v550 = vpack.c.b16 %v480, %v479
    %v551 = vpack.c.b16 %v482, %v481
    %v552 = vpack.c.b16 %v484, %v483
    %v553 = vpack.c.b16 %v486, %v485
    %v554 = vpack.c.b16 %v488, %v487
    %v555 = vpack.c.b16 %v490, %v489
    %v556 = vpack.c.b16 %v492, %v491
    %621 = vmatprep.subr.bf16.mxu0 0
    %622 = vmatpush1.bf16.msra.mxu0 %v493
    %623 = vmatprep.subr.bf16.mxu0 0
    %624 = vmatpush1.bf16.msra.mxu0 %v494
    %625 = vmatprep.subr.bf16.mxu0 0
    %626 = vmatpush1.bf16.msra.mxu0 %v495
    %627 = vmatprep.subr.bf16.mxu0 0
    %628 = vmatpush1.bf16.msra.mxu0 %v496
    %629 = vmatprep.subr.bf16.mxu0 0
    %630 = vmatpush1.bf16.msra.mxu0 %v497
    %631 = vmatprep.subr.bf16.mxu0 0
    %632 = vmatpush1.bf16.msra.mxu0 %v498
    %633 = vmatprep.subr.bf16.mxu0 0
    %634 = vmatpush1.bf16.msra.mxu0 %v499
    %635 = vmatprep.subr.bf16.mxu0 0
    %636 = vmatpush1.bf16.msra.mxu0 %v500
    %637 = vmatprep.subr.bf16.mxu0 0
    %638 = vmatpush1.bf16.msra.mxu0 %v501
    %639 = vmatprep.subr.bf16.mxu0 0
    %640 = vmatpush1.bf16.msra.mxu0 %v502
    %641 = vmatprep.subr.bf16.mxu0 0
    %642 = vmatpush1.bf16.msra.mxu0 %v503
    %643 = vmatprep.subr.bf16.mxu0 0
    %644 = vmatpush1.bf16.msra.mxu0 %v504
    %645 = vmatprep.subr.bf16.mxu0 0
    %646 = vmatpush1.bf16.msra.mxu0 %v505
    %647 = vmatprep.subr.bf16.mxu0 0
    %648 = vmatpush1.bf16.msra.mxu0 %v506
    %649 = vmatprep.subr.bf16.mxu0 0
    %650 = vmatpush1.bf16.msra.mxu0 %v507
    %651 = vmatprep.subr.bf16.mxu0 0
    %652 = vmatpush1.bf16.msra.mxu0 %v508
    %653 = vmatprep.mubr.bf16.mxu0 %v95
    %654 = vmatmul.mubr.bf16.gmra.mrb[0].mxu0 %v94
    %v655 = vpop.f32.mrb[0].mxu0
    %v656 = vadd.f32 %v235, %v655
    %v657 = vpop.f32.mrb[0].mxu0
    %v658 = vpop.f32.mrb[0].mxu0
    %v659 = vpop.f32.mrb[0].mxu0
    %660 = vdwg.mxu0
    %661 = vmatprep.subr.bf16.mxu0 0
    %662 = vmatpush1.bf16.msra.mxu0 %v509
    %663 = vmatprep.subr.bf16.mxu0 0
    %664 = vmatpush1.bf16.msra.mxu0 %v510
    %665 = vmatprep.subr.bf16.mxu0 0
    %666 = vmatpush1.bf16.msra.mxu0 %v511
    %667 = vmatprep.subr.bf16.mxu0 0
    %668 = vmatpush1.bf16.msra.mxu0 %v512
    %669 = vmatprep.subr.bf16.mxu0 0
    %670 = vmatpush1.bf16.msra.mxu0 %v513
    %671 = vmatprep.subr.bf16.mxu0 0
    %672 = vmatpush1.bf16.msra.mxu0 %v514
    %673 = vmatprep.subr.bf16.mxu0 0
    %674 = vmatpush1.bf16.msra.mxu0 %v515
    %675 = vmatprep.subr.bf16.mxu0 0
    %676 = vmatpush1.bf16.msra.mxu0 %v516
    %677 = vmatprep.subr.bf16.mxu0 0
    %678 = vmatpush1.bf16.msra.mxu0 %v517
    %679 = vmatprep.subr.bf16.mxu0 0
    %680 = vmatpush1.bf16.msra.mxu0 %v518
    %681 = vmatprep.subr.bf16.mxu0 0
    %682 = vmatpush1.bf16.msra.mxu0 %v519
    %683 = vmatprep.subr.bf16.mxu0 0
    %684 = vmatpush1.bf16.msra.mxu0 %v520
    %685 = vmatprep.subr.bf16.mxu0 0
    %686 = vmatpush1.bf16.msra.mxu0 %v521
    %687 = vmatprep.subr.bf16.mxu0 0
    %688 = vmatpush1.bf16.msra.mxu0 %v522
    %689 = vmatprep.subr.bf16.mxu0 0
    %690 = vmatpush1.bf16.msra.mxu0 %v523
    %691 = vmatprep.subr.bf16.mxu0 0
    %692 = vmatpush1.bf16.msra.mxu0 %v524
    %693 = vmatprep.mubr.bf16.mxu0 %v97
    %694 = vmatmul.mubr.bf16.gmra.mrb[0].mxu0 %v96
    %v695 = vpop.f32.mrb[0].mxu0
    %v696 = vadd.f32 %v656, %v695
    %v697 = vpop.f32.mrb[0].mxu0
    %v698 = vpop.f32.mrb[0].mxu0
    %v699 = vpop.f32.mrb[0].mxu0
    %700 = vdwg.mxu0
    %701 = vmatprep.subr.bf16.mxu0 0
    %702 = vmatpush1.bf16.msra.mxu0 %v525
    %703 = vmatprep.subr.bf16.mxu0 0
    %704 = vmatpush1.bf16.msra.mxu0 %v526
    %705 = vmatprep.subr.bf16.mxu0 0
    %706 = vmatpush1.bf16.msra.mxu0 %v527
    %707 = vmatprep.subr.bf16.mxu0 0
    %708 = vmatpush1.bf16.msra.mxu0 %v528
    %709 = vmatprep.subr.bf16.mxu0 0
    %710 = vmatpush1.bf16.msra.mxu0 %v529
    %711 = vmatprep.subr.bf16.mxu0 0
    %712 = vmatpush1.bf16.msra.mxu0 %v530
    %713 = vmatprep.subr.bf16.mxu0 0
    %714 = vmatpush1.bf16.msra.mxu0 %v531
    %715 = vmatprep.subr.bf16.mxu0 0
    %716 = vmatpush1.bf16.msra.mxu0 %v532
    %717 = vmatprep.subr.bf16.mxu0 0
    %718 = vmatpush1.bf16.msra.mxu0 %v533
    %719 = vmatprep.subr.bf16.mxu0 0
    %720 = vmatpush1.bf16.msra.mxu0 %v534
    %721 = vmatprep.subr.bf16.mxu0 0
    %722 = vmatpush1.bf16.msra.mxu0 %v535
    %723 = vmatprep.subr.bf16.mxu0 0
    %724 = vmatpush1.bf16.msra.mxu0 %v536
    %725 = vmatprep.subr.bf16.mxu0 0
    %726 = vmatpush1.bf16.msra.mxu0 %v537
    %727 = vmatprep.subr.bf16.mxu0 0
    %728 = vmatpush1.bf16.msra.mxu0 %v538
    %729 = vmatprep.subr.bf16.mxu0 0
    %730 = vmatpush1.bf16.msra.mxu0 %v539
    %731 = vmatprep.subr.bf16.mxu0 0
    %732 = vmatpush1.bf16.msra.mxu0 %v540
    %733 = vmatprep.mubr.bf16.mxu0 %v99
    %734 = vmatmul.mubr.bf16.gmra.mrb[0].mxu0 %v98
    %v735 = vpop.f32.mrb[0].mxu0
    %v736 = vadd.f32 %v696, %v735
    %v737 = vpop.f32.mrb[0].mxu0
    %v738 = vpop.f32.mrb[0].mxu0
    %v739 = vpop.f32.mrb[0].mxu0
    %740 = vdwg.mxu0
    %741 = vmatprep.subr.bf16.mxu0 0
    %742 = vmatpush1.bf16.msra.mxu0 %v541
    %743 = vmatprep.subr.bf16.mxu0 0
    %744 = vmatpush1.bf16.msra.mxu0 %v542
    %745 = vmatprep.subr.bf16.mxu0 0
    %746 = vmatpush1.bf16.msra.mxu0 %v543
    %747 = vmatprep.subr.bf16.mxu0 0
    %748 = vmatpush1.bf16.msra.mxu0 %v544
    %749 = vmatprep.subr.bf16.mxu0 0
    %750 = vmatpush1.bf16.msra.mxu0 %v545
    %751 = vmatprep.subr.bf16.mxu0 0
    %752 = vmatpush1.bf16.msra.mxu0 %v546
    %753 = vmatprep.subr.bf16.mxu0 0
    %754 = vmatpush1.bf16.msra.mxu0 %v547
    %755 = vmatprep.subr.bf16.mxu0 0
    %756 = vmatpush1.bf16.msra.mxu0 %v548
    %757 = vmatprep.subr.bf16.mxu0 0
    %758 = vmatpush1.bf16.msra.mxu0 %v549
    %759 = vmatprep.subr.bf16.mxu0 0
    %760 = vmatpush1.bf16.msra.mxu0 %v550
    %761 = vmatprep.subr.bf16.mxu0 0
    %762 = vmatpush1.bf16.msra.mxu0 %v551
    %763 = vmatprep.subr.bf16.mxu0 0
    %764 = vmatpush1.bf16.msra.mxu0 %v552
    %765 = vmatprep.subr.bf16.mxu0 0
    %766 = vmatpush1.bf16.msra.mxu0 %v553
    %767 = vmatprep.subr.bf16.mxu0 0
    %768 = vmatpush1.bf16.msra.mxu0 %v554
    %769 = vmatprep.subr.bf16.mxu0 0
    %770 = vmatpush1.bf16.msra.mxu0 %v555
    %771 = vmatprep.subr.bf16.mxu0 0
    %772 = vmatpush1.bf16.msra.mxu0 %v556
    %773 = vmatprep.mubr.bf16.mxu0 %v101
    %774 = vmatmul.mubr.bf16.gmra.mrb[0].mxu0 %v100
    %v775 = vpop.f32.mrb[0].mxu0
    %v776 = vadd.f32 %v736, %v775
    %v777 = vpop.f32.mrb[0].mxu0
    %v778 = vpop.f32.mrb[0].mxu0
    %v779 = vpop.f32.mrb[0].mxu0
    %780 = vdwg.mxu0
    %v781 = vsub.f32 0.0, %v776
    %v782 = vmul.f32 %v781, 1.442695
    %v783 = vpow.pop %v782
    %v784 = vadd.f32 %v783, 1.0
    %v785 = vrcp.pop %v784
    %v786 = vpack.c.bf16 %v785, %v785
    %v787 = vld [vmem:[#allocation6] sm:$0xf]
    %v788 = vld [vmem:[#allocation6 + $0x4] sm:$0xf]
    %v789 = vld [vmem:[#allocation6 + $0x8] sm:$0xf]
    %v790 = vld [vmem:[#allocation6 + $0xc] sm:$0xf]
    %v791 = vld [vmem:[#allocation6 + $0x10] sm:$0xf]
    %v792 = vld [vmem:[#allocation6 + $0x14] sm:$0xf]
    %v793 = vld [vmem:[#allocation6 + $0x18] sm:$0xf]
    %v794 = vld [vmem:[#allocation6 + $0x1c] sm:$0xf]
    %v795 = vld [vmem:[#allocation6 + $0x20] sm:$0xf]
    %v796 = vld [vmem:[#allocation6 + $0x24] sm:$0xf]
    %v797 = vld [vmem:[#allocation6 + $0x28] sm:$0xf]
    %v798 = vld [vmem:[#allocation6 + $0x2c] sm:$0xf]
    %v799 = vld [vmem:[#allocation6 + $0x30] sm:$0xf]
    %v800 = vld [vmem:[#allocation6 + $0x34] sm:$0xf]
    %v801 = vld [vmem:[#allocation6 + $0x38] sm:$0xf]
    %v802 = vld [vmem:[#allocation6 + $0x3c] sm:$0xf]
    %v803 = vld [vmem:[%s4] sm:$0x1]
    %v805 = vlaneseq
    %v806 = vshrl.u32 %v805, 7
    %v807 = vsub.s32 0, %v806
    %v808 = vrot.slane %v803, %v807
    %v826 = vunpack.c.l.b16 %v787
    %v827 = vunpack.c.l.b16 %v788
    %v828 = vunpack.c.l.b16 %v789
    %v829 = vunpack.c.l.b16 %v790
    %v830 = vunpack.c.l.b16 %v791
    %v831 = vunpack.c.l.b16 %v792
    %v832 = vunpack.c.l.b16 %v793
    %v833 = vunpack.c.l.b16 %v794
    %v834 = vunpack.c.l.b16 %v795
    %v835 = vunpack.c.l.b16 %v796
    %v836 = vunpack.c.l.b16 %v797
    %v837 = vunpack.c.l.b16 %v798
    %v838 = vunpack.c.l.b16 %v799
    %v839 = vunpack.c.l.b16 %v800
    %v840 = vunpack.c.l.b16 %v801
    %v841 = vunpack.c.l.b16 %v802
    %v842 = vpack.c.b16 %v827, %v826
    %v843 = vpack.c.b16 %v829, %v828
    %v844 = vpack.c.b16 %v831, %v830
    %v845 = vpack.c.b16 %v833, %v832
    %v846 = vpack.c.b16 %v835, %v834
    %v847 = vpack.c.b16 %v837, %v836
    %v848 = vpack.c.b16 %v839, %v838
    %v849 = vpack.c.b16 %v841, %v840
    %858 = vmatprep.subr.bf16.mxu0 0
    %859 = vmatpush1.bf16.msra.mxu0 %v842
    %860 = vmatprep.subr.bf16.mxu0 0
    %861 = vmatpush1.bf16.msra.mxu0 %v843
    %862 = vmatprep.subr.bf16.mxu0 0
    %863 = vmatpush1.bf16.msra.mxu0 %v844
    %864 = vmatprep.subr.bf16.mxu0 0
    %865 = vmatpush1.bf16.msra.mxu0 %v845
    %866 = vmatprep.subr.bf16.mxu0 0
    %867 = vmatpush1.bf16.msra.mxu0 %v846
    %868 = vmatprep.subr.bf16.mxu0 0
    %869 = vmatpush1.bf16.msra.mxu0 %v847
    %870 = vmatprep.subr.bf16.mxu0 0
    %871 = vmatpush1.bf16.msra.mxu0 %v848
    %872 = vmatprep.subr.bf16.mxu0 0
    %873 = vmatpush1.bf16.msra.mxu0 %v849
    %874 = vmatprep.subr.bf16.mxu0 0
    %875 = vmatpush1.bf16.msra.mxu0 0
    %876 = vmatprep.subr.bf16.mxu0 0
    %877 = vmatpush1.bf16.msra.mxu0 0
    %878 = vmatprep.subr.bf16.mxu0 0
    %879 = vmatpush1.bf16.msra.mxu0 0
    %880 = vmatprep.subr.bf16.mxu0 0
    %881 = vmatpush1.bf16.msra.mxu0 0
    %882 = vmatprep.subr.bf16.mxu0 0
    %883 = vmatpush1.bf16.msra.mxu0 0
    %884 = vmatprep.subr.bf16.mxu0 0
    %885 = vmatpush1.bf16.msra.mxu0 0
    %886 = vmatprep.subr.bf16.mxu0 0
    %887 = vmatpush1.bf16.msra.mxu0 0
    %888 = vmatprep.subr.bf16.mxu0 0
    %889 = vmatpush1.bf16.msra.mxu0 0
    %890 = vmatprep.mubr.bf16.mxu0 0
    %891 = vmatmul.mubr.bf16.gmra.mrb[0].mxu0 %v786
    %v892 = vpop.f32.mrb[0].mxu0
    %v893 = vadd.f32 %v808, %v892
    %v894 = vpop.f32.mrb[0].mxu0
    %v895 = vpop.f32.mrb[0].mxu0
    %v896 = vpop.f32.mrb[0].mxu0
    %897 = vdwg.mxu0
    %898 = vst [vmem:[%s5] sm:$0xff] %v893
    // Predicated region
    $region34: #{mlp_forward.1} parent=1 // pred_check
      _
    $region35: #{mlp_forward.1} parent=1 // pred_check_branch
      %900 = sbr.rel (0) target = $region37
    $region36: #{mlp_forward.1} parent=1 // pred_region
      _
    $region37: #{mlp_forward.1} parent=1 // pred_fallthru
      _
    // Predicated region
    $region38: #{mlp_forward.1} parent=1 // pred_check
      _
    $region39: #{mlp_forward.1} parent=1 // pred_check_branch
      %902 = sbr.rel (0) target = $region41
    $region40: #{mlp_forward.1} parent=1 // pred_region
      _
    $region41: #{mlp_forward.1} parent=1 // pred_fallthru
      _
    %903 = vsyncpa [#allocation3], 1
    %904 = vsyncpa [#allocation5], 1

</llo_original>
